<compile_context>
chip_gen: v5e
topology: v5e:2x2
jax: 0.10.0
libtpu: 0.0.40
codegen_flags: <defaults>
</compile_context>

<pallas_src>
import jax
import jax.numpy as jnp
from jax.experimental import pallas as pl
from jax.experimental.pallas import tpu as pltpu


def recsys_kernel(users_ref, movies_ref,        # VMEM (R,128) int32 index tiles
                  user_tbl_ref, movie_tbl_ref,  # VMEM (NU,64) / (NM,64) f32
                  w_ref, b_ref,                 # VMEM (1,128), (1,1) f32
                  out_ref):                     # VMEM (R,128) f32
    NU, D = user_tbl_ref.shape
    NM, _ = movie_tbl_ref.shape
    R, L = out_ref.shape

    # --- Projection: per-row scores su[n] = user_tbl[n] . w_user (movies alike).
    # Table blocks have constant index_maps -> DMA'd once; this is two tiny MXU
    # ops per tile (K=64). For very large vocabs hoist to the wrapper instead.
    w = w_ref[...]
    wu = w[:, :D]                                   # (1, D) user half
    wm = w[:, D:]                                   # (1, D) movie half
    contract_k = (((1,), (1,)), ((), ()))           # contract the D axis
    su = jax.lax.dot_general(wu, user_tbl_ref[...], contract_k,
                             preferred_element_type=jnp.float32)   # (1, NU)
    sm = jax.lax.dot_general(wm, movie_tbl_ref[...], contract_k,
                             preferred_element_type=jnp.float32)   # (1, NM)

    # --- Vectorized scalar-score gather: one-hot(idx) contracted on the MXU.
    uids = users_ref[...]                           # (R, L) int32
    mids = movies_ref[...]
    iota_u = jax.lax.broadcasted_iota(jnp.int32, (NU, L), 0)   # hoisted, built once
    iota_m = jax.lax.broadcasted_iota(jnp.int32, (NM, L), 0)
    contract_g = (((1,), (0,)), ((), ()))           # contract the vocab axis

    rows = []
    for r in range(R):                              # static -> fully unrolled
        oh_u = jnp.where(iota_u == uids[r:r + 1, :], 1.0, 0.0)     # (NU, L) f32
        oh_m = jnp.where(iota_m == mids[r:r + 1, :], 1.0, 0.0)     # (NM, L) f32
        gu = jax.lax.dot_general(su, oh_u, contract_g,
                                 preferred_element_type=jnp.float32)  # (1, L)
        gm = jax.lax.dot_general(sm, oh_m, contract_g,
                                 preferred_element_type=jnp.float32)  # (1, L)
        rows.append(gu + gm)

    # Single (R,128) sublane- and lane-dense store (unmasked vst).
    out_ref[...] = jnp.concatenate(rows, axis=0) + b_ref[...]


def recsys_forward(users, movies, user_tbl, movie_tbl, weight, bias, *, tb=1024):
    """users/movies: (B,) int; user_tbl: (NU,64); movie_tbl: (NM,64);
    weight: (1,128) torch nn.Linear layout; bias: (1,). Returns (B,1) f32."""
    assert tb % 1024 == 0, "tb must be a multiple of 1024 (aligned (8,128) blocks)"
    B = users.shape[0]
    NU, D = user_tbl.shape
    NM, _ = movie_tbl.shape

    n_tiles = pl.cdiv(B, tb)
    Bp = n_tiles * tb
    R = tb // 128                      # sublane rows per tile (multiple of 8)

    # Clamp (correctness concern) + pad with valid ids; padded rows sliced off.
    users_p = jnp.clip(users.astype(jnp.int32), 0, NU - 1)
    movies_p = jnp.clip(movies.astype(jnp.int32), 0, NM - 1)
    users_p = jnp.pad(users_p, (0, Bp - B)).reshape(n_tiles * R, 128)
    movies_p = jnp.pad(movies_p, (0, Bp - B)).reshape(n_tiles * R, 128)

    w = weight.astype(jnp.float32).reshape(1, 2 * D)
    b2 = bias.astype(jnp.float32).reshape(1, 1)

    grid_spec = pltpu.PrefetchScalarGridSpec(
        num_scalar_prefetch=0,
        grid=(n_tiles,),
        in_specs=[
            pl.BlockSpec((R, 128), lambda i: (i, 0)),    # user ids (per tile)
            pl.BlockSpec((R, 128), lambda i: (i, 0)),    # movie ids (per tile)
            # Constant blocks: DMA'd once and revisited across the grid.
            pl.BlockSpec((NU, D), lambda i: (0, 0)),
            pl.BlockSpec((NM, D), lambda i: (0, 0)),
            pl.BlockSpec((1, 2 * D), lambda i: (0, 0)),
            pl.BlockSpec((1, 1), lambda i: (0, 0)),
        ],
        out_specs=pl.BlockSpec((R, 128), lambda i: (i, 0)),
    )

    out = pl.pallas_call(
        recsys_kernel,
        out_shape=jax.ShapeDtypeStruct((n_tiles * R, 128), jnp.float32),
        grid_spec=grid_spec,
        compiler_params=pltpu.CompilerParams(
            dimension_semantics=("parallel",),      # shard batch tiles across TCs
            vmem_limit_bytes=64 * 1024 * 1024),     # headroom for bigger vocabs
    )(users_p, movies_p,
      user_tbl.astype(jnp.float32), movie_tbl.astype(jnp.float32),
      w, b2)

    return out.reshape(Bp)[:B].reshape(B, 1)


if __name__ == "__main__":
    key = jax.random.PRNGKey(0)
    k_ut, k_mt, k_w, k_b, k_u, k_m = jax.random.split(key, 6)

    num_users, num_movies, emb_dim, B = 32, 48, 64, 8

    # nn.Embedding default init: N(0, 1)
    user_tbl = jax.random.normal(k_ut, (num_users, emb_dim), dtype=jnp.float32)
    movie_tbl = jax.random.normal(k_mt, (num_movies, emb_dim), dtype=jnp.float32)

    # nn.Linear(128, 1) default init: U(-1/sqrt(128), 1/sqrt(128))
    bound = 1.0 / jnp.sqrt(128.0)
    weight = jax.random.uniform(k_w, (1, 2 * emb_dim), minval=-bound,
                                maxval=bound, dtype=jnp.float32)  # (out, in)
    bias = jax.random.uniform(k_b, (1,), minval=-bound, maxval=bound,
                              dtype=jnp.float32)

    users = jax.random.randint(k_u, (B,), 0, num_users, dtype=jnp.int32)
    movies = jax.random.randint(k_m, (B,), 0, num_movies, dtype=jnp.int32)

    out = recsys_forward(users, movies, user_tbl, movie_tbl, weight, bias)
    out = jax.block_until_ready(out)

    # Plain-JAX reference for correctness (matches the torch forward).
    ref = (jnp.concatenate([user_tbl[users], movie_tbl[movies]], axis=1)
           @ weight.T + bias)
    assert out.shape == (B, 1)
    assert jnp.allclose(out, ref, atol=1e-4, rtol=1e-4), (out, ref)

    print("KERNEL_OK")
</pallas_src>

<mosaic_0001>
module attributes {stable_mosaic.version = 11 : i64} {
  func.func @recsys_kernel(%arg0: i32, %arg1: memref<8x128xi32, #tpu.memory_space<vmem>>, %arg2: memref<8x128xi32, #tpu.memory_space<vmem>>, %arg3: memref<32x64xf32, #tpu.memory_space<vmem>>, %arg4: memref<48x64xf32, #tpu.memory_space<vmem>>, %arg5: memref<1x128xf32, #tpu.memory_space<vmem>>, %arg6: memref<1x1xf32, #tpu.memory_space<vmem>>, %arg7: memref<8x128xf32, #tpu.memory_space<vmem>>) attributes {dimension_semantics = [#tpu.dimension_semantics<parallel>], iteration_bounds = array<i64: 1>, scalar_prefetch = 0 : i64, scratch_operands = 0 : i64, tpu.core_type = #tpu.core_type<tc>, window_params = [{transform_indices = @transform_0, window_bounds = array<i64: 8, 128>}, {transform_indices = @transform_1, window_bounds = array<i64: 8, 128>}, {pipeline_mode = #tpu.pipeline_mode<synchronous>, transform_indices = @transform_2, window_bounds = array<i64: 32, 64>}, {pipeline_mode = #tpu.pipeline_mode<synchronous>, transform_indices = @transform_3, window_bounds = array<i64: 48, 64>}, {pipeline_mode = #tpu.pipeline_mode<synchronous>, transform_indices = @transform_4, window_bounds = array<i64: 1, 128>}, {pipeline_mode = #tpu.pipeline_mode<synchronous>, transform_indices = @transform_5, window_bounds = array<i64: 1, 1>}, {transform_indices = @transform_6, window_bounds = array<i64: 8, 128>}]} {
    %c0 = arith.constant 0 : index
    %c0_0 = arith.constant 0 : index
    %0 = vector.load %arg5[%c0, %c0_0] : memref<1x128xf32, #tpu.memory_space<vmem>>, vector<1x128xf32>
    %1 = vector.extract_strided_slice %0 {offsets = [0, 0], sizes = [1, 64], strides = [1, 1]} : vector<1x128xf32> to vector<1x64xf32>
    %2 = vector.extract_strided_slice %0 {offsets = [0, 64], sizes = [1, 64], strides = [1, 1]} : vector<1x128xf32> to vector<1x64xf32>
    %c0_1 = arith.constant 0 : index
    %c0_2 = arith.constant 0 : index
    %3 = vector.load %arg3[%c0_1, %c0_2] : memref<32x64xf32, #tpu.memory_space<vmem>>, vector<32x64xf32>
    %cst = arith.constant dense<0.000000e+00> : vector<1x32xf32>
    %4 = tpu.matmul %1, %3, %cst {dimension_numbers = #tpu.dot_dimension_numbers<[1], [1], [0], [0], [0, 0, 1, 0], [], []>} : vector<1x64xf32>, vector<32x64xf32>, vector<1x32xf32> -> vector<1x32xf32>
    %c0_3 = arith.constant 0 : index
    %c0_4 = arith.constant 0 : index
    %5 = vector.load %arg4[%c0_3, %c0_4] : memref<48x64xf32, #tpu.memory_space<vmem>>, vector<48x64xf32>
    %cst_5 = arith.constant dense<0.000000e+00> : vector<1x48xf32>
    %6 = tpu.matmul %2, %5, %cst_5 {dimension_numbers = #tpu.dot_dimension_numbers<[1], [1], [0], [0], [0, 0, 1, 0], [], []>} : vector<1x64xf32>, vector<48x64xf32>, vector<1x48xf32> -> vector<1x48xf32>
    %c0_6 = arith.constant 0 : index
    %c0_7 = arith.constant 0 : index
    %7 = vector.load %arg1[%c0_6, %c0_7] : memref<8x128xi32, #tpu.memory_space<vmem>>, vector<8x128xi32>
    %c0_8 = arith.constant 0 : index
    %c0_9 = arith.constant 0 : index
    %8 = vector.load %arg2[%c0_8, %c0_9] : memref<8x128xi32, #tpu.memory_space<vmem>>, vector<8x128xi32>
    %9 = tpu.iota {dimensions = array<i32: 0>} : vector<32x128xi32>
    %10 = tpu.iota {dimensions = array<i32: 0>} : vector<48x128xi32>
    %11 = vector.extract_strided_slice %7 {offsets = [0, 0], sizes = [1, 128], strides = [1, 1]} : vector<8x128xi32> to vector<1x128xi32>
    %12 = vector.broadcast %11 : vector<1x128xi32> to vector<32x128xi32>
    %13 = arith.cmpi eq, %9, %12 : vector<32x128xi32>
    %cst_10 = arith.constant 1.000000e+00 : f32
    %cst_11 = arith.constant 0.000000e+00 : f32
    %14 = vector.broadcast %cst_10 : f32 to vector<32x128xf32>
    %15 = vector.broadcast %cst_11 : f32 to vector<32x128xf32>
    %16 = arith.select %13, %14, %15 : vector<32x128xi1>, vector<32x128xf32>
    %17 = vector.extract_strided_slice %8 {offsets = [0, 0], sizes = [1, 128], strides = [1, 1]} : vector<8x128xi32> to vector<1x128xi32>
    %18 = vector.broadcast %17 : vector<1x128xi32> to vector<48x128xi32>
    %19 = arith.cmpi eq, %10, %18 : vector<48x128xi32>
    %cst_12 = arith.constant 1.000000e+00 : f32
    %cst_13 = arith.constant 0.000000e+00 : f32
    %20 = vector.broadcast %cst_12 : f32 to vector<48x128xf32>
    %21 = vector.broadcast %cst_13 : f32 to vector<48x128xf32>
    %22 = arith.select %19, %20, %21 : vector<48x128xi1>, vector<48x128xf32>
    %cst_14 = arith.constant dense<0.000000e+00> : vector<1x128xf32>
    %23 = tpu.matmul %4, %16, %cst_14 {dimension_numbers = #tpu.dot_dimension_numbers<[1], [0], [0], [1], [0, 0, 1, 1], [], []>} : vector<1x32xf32>, vector<32x128xf32>, vector<1x128xf32> -> vector<1x128xf32>
    %cst_15 = arith.constant dense<0.000000e+00> : vector<1x128xf32>
    %24 = tpu.matmul %6, %22, %cst_15 {dimension_numbers = #tpu.dot_dimension_numbers<[1], [0], [0], [1], [0, 0, 1, 1], [], []>} : vector<1x48xf32>, vector<48x128xf32>, vector<1x128xf32> -> vector<1x128xf32>
    %25 = arith.addf %23, %24 : vector<1x128xf32>
    %26 = vector.extract_strided_slice %7 {offsets = [1, 0], sizes = [1, 128], strides = [1, 1]} : vector<8x128xi32> to vector<1x128xi32>
    %27 = vector.broadcast %26 : vector<1x128xi32> to vector<32x128xi32>
    %28 = arith.cmpi eq, %9, %27 : vector<32x128xi32>
    %cst_16 = arith.constant 1.000000e+00 : f32
    %cst_17 = arith.constant 0.000000e+00 : f32
    %29 = vector.broadcast %cst_16 : f32 to vector<32x128xf32>
    %30 = vector.broadcast %cst_17 : f32 to vector<32x128xf32>
    %31 = arith.select %28, %29, %30 : vector<32x128xi1>, vector<32x128xf32>
    %32 = vector.extract_strided_slice %8 {offsets = [1, 0], sizes = [1, 128], strides = [1, 1]} : vector<8x128xi32> to vector<1x128xi32>
    %33 = vector.broadcast %32 : vector<1x128xi32> to vector<48x128xi32>
    %34 = arith.cmpi eq, %10, %33 : vector<48x128xi32>
    %cst_18 = arith.constant 1.000000e+00 : f32
    %cst_19 = arith.constant 0.000000e+00 : f32
    %35 = vector.broadcast %cst_18 : f32 to vector<48x128xf32>
    %36 = vector.broadcast %cst_19 : f32 to vector<48x128xf32>
    %37 = arith.select %34, %35, %36 : vector<48x128xi1>, vector<48x128xf32>
    %cst_20 = arith.constant dense<0.000000e+00> : vector<1x128xf32>
    %38 = tpu.matmul %4, %31, %cst_20 {dimension_numbers = #tpu.dot_dimension_numbers<[1], [0], [0], [1], [0, 0, 1, 1], [], []>} : vector<1x32xf32>, vector<32x128xf32>, vector<1x128xf32> -> vector<1x128xf32>
    %cst_21 = arith.constant dense<0.000000e+00> : vector<1x128xf32>
    %39 = tpu.matmul %6, %37, %cst_21 {dimension_numbers = #tpu.dot_dimension_numbers<[1], [0], [0], [1], [0, 0, 1, 1], [], []>} : vector<1x48xf32>, vector<48x128xf32>, vector<1x128xf32> -> vector<1x128xf32>
    %40 = arith.addf %38, %39 : vector<1x128xf32>
    %41 = vector.extract_strided_slice %7 {offsets = [2, 0], sizes = [1, 128], strides = [1, 1]} : vector<8x128xi32> to vector<1x128xi32>
    %42 = vector.broadcast %41 : vector<1x128xi32> to vector<32x128xi32>
    %43 = arith.cmpi eq, %9, %42 : vector<32x128xi32>
    %cst_22 = arith.constant 1.000000e+00 : f32
    %cst_23 = arith.constant 0.000000e+00 : f32
    %44 = vector.broadcast %cst_22 : f32 to vector<32x128xf32>
    %45 = vector.broadcast %cst_23 : f32 to vector<32x128xf32>
    %46 = arith.select %43, %44, %45 : vector<32x128xi1>, vector<32x128xf32>
    %47 = vector.extract_strided_slice %8 {offsets = [2, 0], sizes = [1, 128], strides = [1, 1]} : vector<8x128xi32> to vector<1x128xi32>
    %48 = vector.broadcast %47 : vector<1x128xi32> to vector<48x128xi32>
    %49 = arith.cmpi eq, %10, %48 : vector<48x128xi32>
    %cst_24 = arith.constant 1.000000e+00 : f32
    %cst_25 = arith.constant 0.000000e+00 : f32
    %50 = vector.broadcast %cst_24 : f32 to vector<48x128xf32>
    %51 = vector.broadcast %cst_25 : f32 to vector<48x128xf32>
    %52 = arith.select %49, %50, %51 : vector<48x128xi1>, vector<48x128xf32>
    %cst_26 = arith.constant dense<0.000000e+00> : vector<1x128xf32>
    %53 = tpu.matmul %4, %46, %cst_26 {dimension_numbers = #tpu.dot_dimension_numbers<[1], [0], [0], [1], [0, 0, 1, 1], [], []>} : vector<1x32xf32>, vector<32x128xf32>, vector<1x128xf32> -> vector<1x128xf32>
    %cst_27 = arith.constant dense<0.000000e+00> : vector<1x128xf32>
    %54 = tpu.matmul %6, %52, %cst_27 {dimension_numbers = #tpu.dot_dimension_numbers<[1], [0], [0], [1], [0, 0, 1, 1], [], []>} : vector<1x48xf32>, vector<48x128xf32>, vector<1x128xf32> -> vector<1x128xf32>
    %55 = arith.addf %53, %54 : vector<1x128xf32>
    %56 = vector.extract_strided_slice %7 {offsets = [3, 0], sizes = [1, 128], strides = [1, 1]} : vector<8x128xi32> to vector<1x128xi32>
    %57 = vector.broadcast %56 : vector<1x128xi32> to vector<32x128xi32>
    %58 = arith.cmpi eq, %9, %57 : vector<32x128xi32>
    %cst_28 = arith.constant 1.000000e+00 : f32
    %cst_29 = arith.constant 0.000000e+00 : f32
    %59 = vector.broadcast %cst_28 : f32 to vector<32x128xf32>
    %60 = vector.broadcast %cst_29 : f32 to vector<32x128xf32>
    %61 = arith.select %58, %59, %60 : vector<32x128xi1>, vector<32x128xf32>
    %62 = vector.extract_strided_slice %8 {offsets = [3, 0], sizes = [1, 128], strides = [1, 1]} : vector<8x128xi32> to vector<1x128xi32>
    %63 = vector.broadcast %62 : vector<1x128xi32> to vector<48x128xi32>
    %64 = arith.cmpi eq, %10, %63 : vector<48x128xi32>
    %cst_30 = arith.constant 1.000000e+00 : f32
    %cst_31 = arith.constant 0.000000e+00 : f32
    %65 = vector.broadcast %cst_30 : f32 to vector<48x128xf32>
    %66 = vector.broadcast %cst_31 : f32 to vector<48x128xf32>
    %67 = arith.select %64, %65, %66 : vector<48x128xi1>, vector<48x128xf32>
    %cst_32 = arith.constant dense<0.000000e+00> : vector<1x128xf32>
    %68 = tpu.matmul %4, %61, %cst_32 {dimension_numbers = #tpu.dot_dimension_numbers<[1], [0], [0], [1], [0, 0, 1, 1], [], []>} : vector<1x32xf32>, vector<32x128xf32>, vector<1x128xf32> -> vector<1x128xf32>
    %cst_33 = arith.constant dense<0.000000e+00> : vector<1x128xf32>
    %69 = tpu.matmul %6, %67, %cst_33 {dimension_numbers = #tpu.dot_dimension_numbers<[1], [0], [0], [1], [0, 0, 1, 1], [], []>} : vector<1x48xf32>, vector<48x128xf32>, vector<1x128xf32> -> vector<1x128xf32>
    %70 = arith.addf %68, %69 : vector<1x128xf32>
    %71 = vector.extract_strided_slice %7 {offsets = [4, 0], sizes = [1, 128], strides = [1, 1]} : vector<8x128xi32> to vector<1x128xi32>
    %72 = vector.broadcast %71 : vector<1x128xi32> to vector<32x128xi32>
    %73 = arith.cmpi eq, %9, %72 : vector<32x128xi32>
    %cst_34 = arith.constant 1.000000e+00 : f32
    %cst_35 = arith.constant 0.000000e+00 : f32
    %74 = vector.broadcast %cst_34 : f32 to vector<32x128xf32>
    %75 = vector.broadcast %cst_35 : f32 to vector<32x128xf32>
    %76 = arith.select %73, %74, %75 : vector<32x128xi1>, vector<32x128xf32>
    %77 = vector.extract_strided_slice %8 {offsets = [4, 0], sizes = [1, 128], strides = [1, 1]} : vector<8x128xi32> to vector<1x128xi32>
    %78 = vector.broadcast %77 : vector<1x128xi32> to vector<48x128xi32>
    %79 = arith.cmpi eq, %10, %78 : vector<48x128xi32>
    %cst_36 = arith.constant 1.000000e+00 : f32
    %cst_37 = arith.constant 0.000000e+00 : f32
    %80 = vector.broadcast %cst_36 : f32 to vector<48x128xf32>
    %81 = vector.broadcast %cst_37 : f32 to vector<48x128xf32>
    %82 = arith.select %79, %80, %81 : vector<48x128xi1>, vector<48x128xf32>
    %cst_38 = arith.constant dense<0.000000e+00> : vector<1x128xf32>
    %83 = tpu.matmul %4, %76, %cst_38 {dimension_numbers = #tpu.dot_dimension_numbers<[1], [0], [0], [1], [0, 0, 1, 1], [], []>} : vector<1x32xf32>, vector<32x128xf32>, vector<1x128xf32> -> vector<1x128xf32>
    %cst_39 = arith.constant dense<0.000000e+00> : vector<1x128xf32>
    %84 = tpu.matmul %6, %82, %cst_39 {dimension_numbers = #tpu.dot_dimension_numbers<[1], [0], [0], [1], [0, 0, 1, 1], [], []>} : vector<1x48xf32>, vector<48x128xf32>, vector<1x128xf32> -> vector<1x128xf32>
    %85 = arith.addf %83, %84 : vector<1x128xf32>
    %86 = vector.extract_strided_slice %7 {offsets = [5, 0], sizes = [1, 128], strides = [1, 1]} : vector<8x128xi32> to vector<1x128xi32>
    %87 = vector.broadcast %86 : vector<1x128xi32> to vector<32x128xi32>
    %88 = arith.cmpi eq, %9, %87 : vector<32x128xi32>
    %cst_40 = arith.constant 1.000000e+00 : f32
    %cst_41 = arith.constant 0.000000e+00 : f32
    %89 = vector.broadcast %cst_40 : f32 to vector<32x128xf32>
    %90 = vector.broadcast %cst_41 : f32 to vector<32x128xf32>
    %91 = arith.select %88, %89, %90 : vector<32x128xi1>, vector<32x128xf32>
    %92 = vector.extract_strided_slice %8 {offsets = [5, 0], sizes = [1, 128], strides = [1, 1]} : vector<8x128xi32> to vector<1x128xi32>
    %93 = vector.broadcast %92 : vector<1x128xi32> to vector<48x128xi32>
    %94 = arith.cmpi eq, %10, %93 : vector<48x128xi32>
    %cst_42 = arith.constant 1.000000e+00 : f32
    %cst_43 = arith.constant 0.000000e+00 : f32
    %95 = vector.broadcast %cst_42 : f32 to vector<48x128xf32>
    %96 = vector.broadcast %cst_43 : f32 to vector<48x128xf32>
    %97 = arith.select %94, %95, %96 : vector<48x128xi1>, vector<48x128xf32>
    %cst_44 = arith.constant dense<0.000000e+00> : vector<1x128xf32>
    %98 = tpu.matmul %4, %91, %cst_44 {dimension_numbers = #tpu.dot_dimension_numbers<[1], [0], [0], [1], [0, 0, 1, 1], [], []>} : vector<1x32xf32>, vector<32x128xf32>, vector<1x128xf32> -> vector<1x128xf32>
    %cst_45 = arith.constant dense<0.000000e+00> : vector<1x128xf32>
    %99 = tpu.matmul %6, %97, %cst_45 {dimension_numbers = #tpu.dot_dimension_numbers<[1], [0], [0], [1], [0, 0, 1, 1], [], []>} : vector<1x48xf32>, vector<48x128xf32>, vector<1x128xf32> -> vector<1x128xf32>
    %100 = arith.addf %98, %99 : vector<1x128xf32>
    %101 = vector.extract_strided_slice %7 {offsets = [6, 0], sizes = [1, 128], strides = [1, 1]} : vector<8x128xi32> to vector<1x128xi32>
    %102 = vector.broadcast %101 : vector<1x128xi32> to vector<32x128xi32>
    %103 = arith.cmpi eq, %9, %102 : vector<32x128xi32>
    %cst_46 = arith.constant 1.000000e+00 : f32
    %cst_47 = arith.constant 0.000000e+00 : f32
    %104 = vector.broadcast %cst_46 : f32 to vector<32x128xf32>
    %105 = vector.broadcast %cst_47 : f32 to vector<32x128xf32>
    %106 = arith.select %103, %104, %105 : vector<32x128xi1>, vector<32x128xf32>
    %107 = vector.extract_strided_slice %8 {offsets = [6, 0], sizes = [1, 128], strides = [1, 1]} : vector<8x128xi32> to vector<1x128xi32>
    %108 = vector.broadcast %107 : vector<1x128xi32> to vector<48x128xi32>
    %109 = arith.cmpi eq, %10, %108 : vector<48x128xi32>
    %cst_48 = arith.constant 1.000000e+00 : f32
    %cst_49 = arith.constant 0.000000e+00 : f32
    %110 = vector.broadcast %cst_48 : f32 to vector<48x128xf32>
    %111 = vector.broadcast %cst_49 : f32 to vector<48x128xf32>
    %112 = arith.select %109, %110, %111 : vector<48x128xi1>, vector<48x128xf32>
    %cst_50 = arith.constant dense<0.000000e+00> : vector<1x128xf32>
    %113 = tpu.matmul %4, %106, %cst_50 {dimension_numbers = #tpu.dot_dimension_numbers<[1], [0], [0], [1], [0, 0, 1, 1], [], []>} : vector<1x32xf32>, vector<32x128xf32>, vector<1x128xf32> -> vector<1x128xf32>
    %cst_51 = arith.constant dense<0.000000e+00> : vector<1x128xf32>
    %114 = tpu.matmul %6, %112, %cst_51 {dimension_numbers = #tpu.dot_dimension_numbers<[1], [0], [0], [1], [0, 0, 1, 1], [], []>} : vector<1x48xf32>, vector<48x128xf32>, vector<1x128xf32> -> vector<1x128xf32>
    %115 = arith.addf %113, %114 : vector<1x128xf32>
    %116 = vector.extract_strided_slice %7 {offsets = [7, 0], sizes = [1, 128], strides = [1, 1]} : vector<8x128xi32> to vector<1x128xi32>
    %117 = vector.broadcast %116 : vector<1x128xi32> to vector<32x128xi32>
    %118 = arith.cmpi eq, %9, %117 : vector<32x128xi32>
    %cst_52 = arith.constant 1.000000e+00 : f32
    %cst_53 = arith.constant 0.000000e+00 : f32
    %119 = vector.broadcast %cst_52 : f32 to vector<32x128xf32>
    %120 = vector.broadcast %cst_53 : f32 to vector<32x128xf32>
    %121 = arith.select %118, %119, %120 : vector<32x128xi1>, vector<32x128xf32>
    %122 = vector.extract_strided_slice %8 {offsets = [7, 0], sizes = [1, 128], strides = [1, 1]} : vector<8x128xi32> to vector<1x128xi32>
    %123 = vector.broadcast %122 : vector<1x128xi32> to vector<48x128xi32>
    %124 = arith.cmpi eq, %10, %123 : vector<48x128xi32>
    %cst_54 = arith.constant 1.000000e+00 : f32
    %cst_55 = arith.constant 0.000000e+00 : f32
    %125 = vector.broadcast %cst_54 : f32 to vector<48x128xf32>
    %126 = vector.broadcast %cst_55 : f32 to vector<48x128xf32>
    %127 = arith.select %124, %125, %126 : vector<48x128xi1>, vector<48x128xf32>
    %cst_56 = arith.constant dense<0.000000e+00> : vector<1x128xf32>
    %128 = tpu.matmul %4, %121, %cst_56 {dimension_numbers = #tpu.dot_dimension_numbers<[1], [0], [0], [1], [0, 0, 1, 1], [], []>} : vector<1x32xf32>, vector<32x128xf32>, vector<1x128xf32> -> vector<1x128xf32>
    %cst_57 = arith.constant dense<0.000000e+00> : vector<1x128xf32>
    %129 = tpu.matmul %6, %127, %cst_57 {dimension_numbers = #tpu.dot_dimension_numbers<[1], [0], [0], [1], [0, 0, 1, 1], [], []>} : vector<1x48xf32>, vector<48x128xf32>, vector<1x128xf32> -> vector<1x128xf32>
    %130 = arith.addf %128, %129 : vector<1x128xf32>
    %131 = tpu.concatenate %25, %40, %55, %70, %85, %100, %115, %130 in 0 : vector<1x128xf32>, vector<1x128xf32>, vector<1x128xf32>, vector<1x128xf32>, vector<1x128xf32>, vector<1x128xf32>, vector<1x128xf32>, vector<1x128xf32> -> vector<8x128xf32>
    %c0_58 = arith.constant 0 : index
    %c0_59 = arith.constant 0 : index
    %132 = vector.load %arg6[%c0_58, %c0_59] : memref<1x1xf32, #tpu.memory_space<vmem>>, vector<1x1xf32>
    %133 = vector.broadcast %132 : vector<1x1xf32> to vector<8x128xf32>
    %134 = arith.addf %131, %133 : vector<8x128xf32>
    %c0_60 = arith.constant 0 : index
    %c0_61 = arith.constant 0 : index
    %135 = vector.load %arg7[%c0_60, %c0_61] : memref<8x128xf32, #tpu.memory_space<vmem>>, vector<8x128xf32>
    tpu.vector_store %arg7[%c0_60, %c0_61], %134 {strides = array<i32>} : memref<8x128xf32, #tpu.memory_space<vmem>>, vector<8x128xf32>,
    return
  }
  func.func @transform_0(%arg0: i32) -> (i32, i32) {
    %c0_i32 = arith.constant 0 : i32
    %c0_i32_0 = arith.constant 0 : i32
    return %arg0, %c0_i32 : i32, i32
  }
  func.func @transform_1(%arg0: i32) -> (i32, i32) {
    %c0_i32 = arith.constant 0 : i32
    %c0_i32_0 = arith.constant 0 : i32
    return %arg0, %c0_i32 : i32, i32
  }
  func.func @transform_2(%arg0: i32) -> (i32, i32) {
    %c0_i32 = arith.constant 0 : i32
    %c0_i32_0 = arith.constant 0 : i32
    %c0_i32_1 = arith.constant 0 : i32
    return %c0_i32, %c0_i32_0 : i32, i32
  }
  func.func @transform_3(%arg0: i32) -> (i32, i32) {
    %c0_i32 = arith.constant 0 : i32
    %c0_i32_0 = arith.constant 0 : i32
    %c0_i32_1 = arith.constant 0 : i32
    return %c0_i32, %c0_i32_0 : i32, i32
  }
  func.func @transform_4(%arg0: i32) -> (i32, i32) {
    %c0_i32 = arith.constant 0 : i32
    %c0_i32_0 = arith.constant 0 : i32
    %c0_i32_1 = arith.constant 0 : i32
    return %c0_i32, %c0_i32_0 : i32, i32
  }
  func.func @transform_5(%arg0: i32) -> (i32, i32) {
    %c0_i32 = arith.constant 0 : i32
    %c0_i32_0 = arith.constant 0 : i32
    %c0_i32_1 = arith.constant 0 : i32
    return %c0_i32, %c0_i32_0 : i32, i32
  }
  func.func @transform_6(%arg0: i32) -> (i32, i32) {
    %c0_i32 = arith.constant 0 : i32
    %c0_i32_0 = arith.constant 0 : i32
    return %arg0, %c0_i32 : i32, i32
  }
}

</mosaic_0001>

<llo_original>
// kernel: tpu_custom_call.1
$region0: #{tpu_custom_call.1}
  #allocation0 [shape = 'u32[]', space=smem, size = 0x4, offset = 0x4, fixed_abs, tag = 'smem constant byte address 0x4 - core index']
  #allocation1 [shape = 'u32[72,128]{1,0:T(1,128)}', space=vmem, size = 0x9000, scoped, tag = 'internal scratch']
  #allocation2 [shape = 'f32[1,1]{1,0:T(1,128)S(1)}', space=vmem, size = 0x200, scoped, tag = 'scoped memory for tpu_custom_call.1']
  %s0 = inlined_call_operand.hbm [shape: s32[8,128], index: 0, kind: input, shape index: {}]
  %s1 = inlined_call_operand.hbm [shape: s32[8,128], index: 1, kind: input, shape index: {}]
  %s2 = inlined_call_operand.hbm [shape: f32[32,64], index: 2, kind: input, shape index: {}]
  %s3 = inlined_call_operand.hbm [shape: f32[48,64], index: 3, kind: input, shape index: {}]
  %s4 = inlined_call_operand.vmem [shape: f32[1,128], index: 4, kind: input, shape index: {}]
  %s5 = inlined_call_operand.<no memory space> [shape: f32[1,1], index: 5, kind: input, shape index: {}]
  %s6 = inlined_call_operand.hbm [shape: f32[8,128], index: 6, kind: output, shape index: {}]
  %s7 = sld [smem:[#allocation0]]
  $region50: #{tpu_custom_call.1} parent=0
    _
  %s9 = ssub.s32 1, %s7
  %s10 = scalar_select 0, %s9, %s7
  %v11 = vstv %s5
  %12 = vst [vmem:[#allocation2] sm:$0x1] %v11
  $region1: #{tpu_custom_call.1} parent=0
    #allocation3 [shape = 'u8[4096]{0}', space=vmem, size = 0x1000, scoped, tag = 'input window, operand 0, single buffered']
    #allocation4 [shape = 's32[1]{0}', space=sflag, size = 0x4, scoped, tag = 'scoped memory for tpu_custom_call.1']
    #allocation5 [shape = 's32[1]{0}', space=sflag, size = 0x4, scoped, tag = 'scoped memory for tpu_custom_call.1']
    #allocation6 [shape = 'u8[4096]{0}', space=vmem, size = 0x1000, scoped, tag = 'input window, operand 1, single buffered']
    #allocation7 [shape = 's32[1]{0}', space=sflag, size = 0x4, scoped, tag = 'scoped memory for tpu_custom_call.1']
    #allocation8 [shape = 'u8[16384]{0}', space=vmem, size = 0x4000, scoped, tag = 'input window, operand 2, single buffered']
    #allocation9 [shape = 'u8[24576]{0}', space=vmem, size = 0x6000, scoped, tag = 'input window, operand 3, single buffered']
    #allocation10 [shape = 's32[1]{0}', space=sflag, size = 0x4, scoped, tag = 'scoped memory for tpu_custom_call.1']
    #allocation11 [shape = 'u8[4096]{0}', space=vmem, size = 0x1000, scoped, tag = 'output window, operand 0, single buffered']
    %13 = vsyncpa [#allocation4], 0
    %14 = vsyncpa [#allocation7], 0
    %15 = vsyncpa [#allocation10], 0
    %16 = vsyncpa [#allocation5], 0
    // Predicated region
    $region2: #{tpu_custom_call.1} parent=1 // pred_check
      _
    $region3: #{tpu_custom_call.1} parent=1 // pred_check_branch
      %18 = sbr.rel (0) target = $region5
    $region4: #{tpu_custom_call.1} parent=1 // pred_region
      %20 = vsyncadd [#allocation4], 0
      %s22 = sshll.u32 %s0, 4
      %s23 = int_to_ptr.hbm [resolvable:$true] %s22
      %s24 = sshll.u32 [#allocation3], 4
      %s25 = int_to_ptr.vmem [resolvable:$true] %s24
      %27 = dma.hbm_to_vmem [thread:$0]  %s23, 128, %s25, [#allocation4]
    $region5: #{tpu_custom_call.1} parent=1 // pred_fallthru
      _
    // Predicated region
    $region6: #{tpu_custom_call.1} parent=1 // pred_check
      _
    $region7: #{tpu_custom_call.1} parent=1 // pred_check_branch
      %29 = sbr.rel (0) target = $region9
    $region8: #{tpu_custom_call.1} parent=1 // pred_region
      %31 = vsyncadd [#allocation7], 0
      %s33 = sshll.u32 %s1, 4
      %s34 = int_to_ptr.hbm [resolvable:$true] %s33
      %s35 = sshll.u32 [#allocation6], 4
      %s36 = int_to_ptr.vmem [resolvable:$true] %s35
      %38 = dma.hbm_to_vmem [thread:$0]  %s34, 128, %s36, [#allocation7]
    $region9: #{tpu_custom_call.1} parent=1 // pred_fallthru
      _
    // Predicated region
    $region10: #{tpu_custom_call.1} parent=1 // pred_check
      _
    $region11: #{tpu_custom_call.1} parent=1 // pred_check_branch
      %40 = sbr.rel (0) target = $region13
    $region12: #{tpu_custom_call.1} parent=1 // pred_region
      %42 = vsyncadd [#allocation7], 0
      %s43 = sshll.u32 %s2, 4
      %s44 = int_to_ptr.hbm [resolvable:$true] %s43
      %s45 = sshll.u32 [#allocation8], 4
      %s46 = int_to_ptr.vmem [resolvable:$true] %s45
      %51 = dma.hbm_to_vmem [thread:$0]  %s44, 512, %s46, [#allocation7], 128, 128, 8
    $region13: #{tpu_custom_call.1} parent=1 // pred_fallthru
      _
    // Predicated region
    $region14: #{tpu_custom_call.1} parent=1 // pred_check
      _
    $region15: #{tpu_custom_call.1} parent=1 // pred_check_branch
      %53 = sbr.rel (0) target = $region17
    $region16: #{tpu_custom_call.1} parent=1 // pred_region
      %55 = vsyncadd [#allocation10], 0
      %s56 = sshll.u32 %s3, 4
      %s57 = int_to_ptr.hbm [resolvable:$true] %s56
      %s58 = sshll.u32 [#allocation9], 4
      %s59 = int_to_ptr.vmem [resolvable:$true] %s58
      %64 = dma.hbm_to_vmem [thread:$0]  %s57, 768, %s59, [#allocation10], 128, 128, 8
    $region17: #{tpu_custom_call.1} parent=1 // pred_fallthru
      _
    // Predicated region
    $region18: #{tpu_custom_call.1} parent=1 // pred_check
      _
    $region19: #{tpu_custom_call.1} parent=1 // pred_check_branch
      %66 = sbr.rel (0) target = $region21
    $region20: #{tpu_custom_call.1} parent=1 // pred_region
      _
    $region21: #{tpu_custom_call.1} parent=1 // pred_fallthru
      _
    // Predicated region
    $region22: #{tpu_custom_call.1} parent=1 // pred_check
      _
    $region23: #{tpu_custom_call.1} parent=1 // pred_check_branch
      %68 = sbr.rel (0) target = $region25
    $region24: #{tpu_custom_call.1} parent=1 // pred_region
      _
    $region25: #{tpu_custom_call.1} parent=1 // pred_fallthru
      _
    // Predicated region
    $region26: #{tpu_custom_call.1} parent=1 // pred_check
      _
    $region27: #{tpu_custom_call.1} parent=1 // pred_check_branch
      %70 = sbr.rel (0) target = $region29
    $region28: #{tpu_custom_call.1} parent=1 // pred_region
      %72 = dma.done [#allocation4], 128
    $region29: #{tpu_custom_call.1} parent=1 // pred_fallthru
      _
    // Predicated region
    $region30: #{tpu_custom_call.1} parent=1 // pred_check
      _
    $region31: #{tpu_custom_call.1} parent=1 // pred_check_branch
      %74 = sbr.rel (0) target = $region33
    $region32: #{tpu_custom_call.1} parent=1 // pred_region
      %76 = dma.done [#allocation7], 128
    $region33: #{tpu_custom_call.1} parent=1 // pred_fallthru
      _
    // Predicated region
    $region34: #{tpu_custom_call.1} parent=1 // pred_check
      _
    $region35: #{tpu_custom_call.1} parent=1 // pred_check_branch
      %78 = sbr.rel (0) target = $region37
    $region36: #{tpu_custom_call.1} parent=1 // pred_region
      %80 = dma.done [#allocation7], 512
    $region37: #{tpu_custom_call.1} parent=1 // pred_fallthru
      _
    // Predicated region
    $region38: #{tpu_custom_call.1} parent=1 // pred_check
      _
    $region39: #{tpu_custom_call.1} parent=1 // pred_check_branch
      %82 = sbr.rel (0) target = $region41
    $region40: #{tpu_custom_call.1} parent=1 // pred_region
      %84 = dma.done [#allocation10], 768
    $region41: #{tpu_custom_call.1} parent=1 // pred_fallthru
      _
    %v85 = vld [vmem:[%s4] sm:$0x1]
    %v86 = vld [vmem:[#allocation8] sm:$0xff]
    %v87 = vld [vmem:[#allocation8 + $0x8] sm:$0xff]
    %v88 = vld [vmem:[#allocation8 + $0x10] sm:$0xff]
    %v89 = vld [vmem:[#allocation8 + $0x18] sm:$0xff]
    %vm90 = vcmask 523264
    %v92 = vsel %vm90, %v85, 0
    %v95 = vsel %vm90, %v86, 0
    %v98 = vsel %vm90, %v87, 0
    %v101 = vsel %vm90, %v88, 0
    %v104 = vsel %vm90, %v89, 0
    %106 = vmatpush.xpose.msra.mxu0 0.0
    %107 = vmatpush.xpose.msra.mxu0 0.0
    %108 = vmatpush.xpose.msra.mxu0 0.0
    %109 = vmatpush.xpose.msra.mxu0 0.0
    %110 = vmatpush.xpose.msra.mxu0 0.0
    %111 = vmatpush.xpose.msra.mxu0 0.0
    %112 = vmatpush.xpose.msra.mxu0 0.0
    %113 = vmatpush.xpose.msra.mxu0 0.0
    %114 = vmatpush.xpose.msra.mxu0 0.0
    %115 = vmatpush.xpose.msra.mxu0 0.0
    %116 = vmatpush.xpose.msra.mxu0 0.0
    %117 = vmatpush.xpose.msra.mxu0 0.0
    %118 = vmatpush.xpose.msra.mxu0 %v104
    %119 = vmatpush.xpose.msra.mxu0 %v101
    %120 = vmatpush.xpose.msra.mxu0 %v98
    %121 = vmatpush.xpose.msra.mxu0 %v95
    %122 = vmatmul.f32.gmra.mxu0 %v92
    %v123 = vpop.f32.mrf.mxu0
    %v124 = vadd.f32 0.0, %v123
    %125 = vdwg.mxu0
    %v126 = vld [vmem:[#allocation9] sm:$0xff]
    %v127 = vld [vmem:[#allocation9 + $0x8] sm:$0xff]
    %v128 = vld [vmem:[#allocation9 + $0x10] sm:$0xff]
    %v129 = vld [vmem:[#allocation9 + $0x18] sm:$0xff]
    %v130 = vld [vmem:[#allocation9 + $0x20] sm:$0xff]
    %v131 = vld [vmem:[#allocation9 + $0x28] sm:$0xff]
    %v132 = vperm.slane %v85, 0
    %133 = vrot.lane.b32.xlu0 %v132, 64
    %v134 = vpop.permute.xlu0 %133
    %v135 = vsel %vm90, %v134, 0
    %v138 = vsel %vm90, %v126, 0
    %v141 = vsel %vm90, %v127, 0
    %v144 = vsel %vm90, %v128, 0
    %v147 = vsel %vm90, %v129, 0
    %v150 = vsel %vm90, %v130, 0
    %v153 = vsel %vm90, %v131, 0
    %155 = vmatpush.xpose.msra.mxu0 0.0
    %156 = vmatpush.xpose.msra.mxu0 0.0
    %157 = vmatpush.xpose.msra.mxu0 0.0
    %158 = vmatpush.xpose.msra.mxu0 0.0
    %159 = vmatpush.xpose.msra.mxu0 0.0
    %160 = vmatpush.xpose.msra.mxu0 0.0
    %161 = vmatpush.xpose.msra.mxu0 0.0
    %162 = vmatpush.xpose.msra.mxu0 0.0
    %163 = vmatpush.xpose.msra.mxu0 0.0
    %164 = vmatpush.xpose.msra.mxu0 0.0
    %165 = vmatpush.xpose.msra.mxu0 %v153
    %166 = vmatpush.xpose.msra.mxu0 %v150
    %167 = vmatpush.xpose.msra.mxu0 %v147
    %168 = vmatpush.xpose.msra.mxu0 %v144
    %169 = vmatpush.xpose.msra.mxu0 %v141
    %170 = vmatpush.xpose.msra.mxu0 %v138
    %171 = vmatmul.f32.gmra.mxu0 %v135
    %v172 = vpop.f32.mrf.mxu0
    %v173 = vadd.f32 0.0, %v172
    %174 = vdwg.mxu0
    %v175 = vld [vmem:[#allocation3] sm:$0xff]
    %v176 = vld [vmem:[#allocation6] sm:$0xff]
    %v177 = vlaneseq
    %v178 = vshrl.u32 %v177, 7
    %v179 = vadd.s32 %v178, 8
    %v180 = vadd.s32 %v178, 16
    %v181 = vadd.s32 %v178, 24
    %v182 = vadd.s32 %v178, 32
    %v183 = vadd.s32 %v178, 40
    %v184 = vperm.slane %v175, 0
    %vm185 = vcmp.eq.s32.totalorder %v178, %v184
    %vm186 = vcmp.eq.s32.totalorder %v179, %v184
    %vm187 = vcmp.eq.s32.totalorder %v180, %v184
    %vm188 = vcmp.eq.s32.totalorder %v181, %v184
    %v189 = vsel %vm185, 1.0, 0.0
    %v190 = vsel %vm186, 1.0, 0.0
    %v191 = vsel %vm187, 1.0, 0.0
    %v192 = vsel %vm188, 1.0, 0.0
    %v193 = vperm.slane %v176, 0
    %vm194 = vcmp.eq.s32.totalorder %v178, %v193
    %vm195 = vcmp.eq.s32.totalorder %v179, %v193
    %vm196 = vcmp.eq.s32.totalorder %v180, %v193
    %vm197 = vcmp.eq.s32.totalorder %v181, %v193
    %vm198 = vcmp.eq.s32.totalorder %v182, %v193
    %vm199 = vcmp.eq.s32.totalorder %v183, %v193
    %v200 = vsel %vm194, 1.0, 0.0
    %v201 = vsel %vm195, 1.0, 0.0
    %v202 = vsel %vm196, 1.0, 0.0
    %v203 = vsel %vm197, 1.0, 0.0
    %v204 = vsel %vm198, 1.0, 0.0
    %v205 = vsel %vm199, 1.0, 0.0
    %vm206 = vcmask 392192
    %v208 = vsel %vm206, %v173, 0
    %210 = vmatpush.msra.mxu0 0.0
    %211 = vmatpush.msra.mxu0 0.0
    %212 = vmatpush.msra.mxu0 0.0
    %213 = vmatpush.msra.mxu0 0.0
    %214 = vmatpush.msra.mxu0 0.0
    %215 = vmatpush.msra.mxu0 0.0
    %216 = vmatpush.msra.mxu0 0.0
    %217 = vmatpush.msra.mxu0 0.0
    %218 = vmatpush.msra.mxu0 0.0
    %219 = vmatpush.msra.mxu0 0.0
    %220 = vmatpush.msra.mxu0 %v205
    %221 = vmatpush.msra.mxu0 %v204
    %222 = vmatpush.msra.mxu0 %v203
    %223 = vmatpush.msra.mxu0 %v202
    %224 = vmatpush.msra.mxu0 %v201
    %225 = vmatpush.msra.mxu0 %v200
    %226 = vmatmul.f32.gmra.mxu0 %v208
    %v227 = vpop.f32.mrf.mxu0
    %v228 = vadd.f32 0.0, %v227
    %229 = vdwg.mxu0
    %vm230 = vcmask 261120
    %v232 = vsel %vm230, %v124, 0
    %234 = vmatpush.msra.mxu0 0.0
    %235 = vmatpush.msra.mxu0 0.0
    %236 = vmatpush.msra.mxu0 0.0
    %237 = vmatpush.msra.mxu0 0.0
    %238 = vmatpush.msra.mxu0 0.0
    %239 = vmatpush.msra.mxu0 0.0
    %240 = vmatpush.msra.mxu0 0.0
    %241 = vmatpush.msra.mxu0 0.0
    %242 = vmatpush.msra.mxu0 0.0
    %243 = vmatpush.msra.mxu0 0.0
    %244 = vmatpush.msra.mxu0 0.0
    %245 = vmatpush.msra.mxu0 0.0
    %246 = vmatpush.msra.mxu0 %v192
    %247 = vmatpush.msra.mxu0 %v191
    %248 = vmatpush.msra.mxu0 %v190
    %249 = vmatpush.msra.mxu0 %v189
    %250 = vmatmul.f32.gmra.mxu0 %v232
    %v251 = vpop.f32.mrf.mxu0
    %v252 = vadd.f32 %v228, %v251
    %253 = vdwg.mxu0
    %v254 = vperm.slane %v175, 1
    %vm255 = vcmp.eq.s32.totalorder %v178, %v254
    %vm256 = vcmp.eq.s32.totalorder %v179, %v254
    %vm257 = vcmp.eq.s32.totalorder %v180, %v254
    %vm258 = vcmp.eq.s32.totalorder %v181, %v254
    %v259 = vsel %vm255, 1.0, 0.0
    %v260 = vsel %vm256, 1.0, 0.0
    %v261 = vsel %vm257, 1.0, 0.0
    %v262 = vsel %vm258, 1.0, 0.0
    %v263 = vperm.slane %v176, 1
    %vm264 = vcmp.eq.s32.totalorder %v178, %v263
    %vm265 = vcmp.eq.s32.totalorder %v179, %v263
    %vm266 = vcmp.eq.s32.totalorder %v180, %v263
    %vm267 = vcmp.eq.s32.totalorder %v181, %v263
    %vm268 = vcmp.eq.s32.totalorder %v182, %v263
    %vm269 = vcmp.eq.s32.totalorder %v183, %v263
    %v270 = vsel %vm264, 1.0, 0.0
    %v271 = vsel %vm265, 1.0, 0.0
    %v272 = vsel %vm266, 1.0, 0.0
    %v273 = vsel %vm267, 1.0, 0.0
    %v274 = vsel %vm268, 1.0, 0.0
    %v275 = vsel %vm269, 1.0, 0.0
    %276 = vmatpush.msra.mxu0 0.0
    %277 = vmatpush.msra.mxu0 0.0
    %278 = vmatpush.msra.mxu0 0.0
    %279 = vmatpush.msra.mxu0 0.0
    %280 = vmatpush.msra.mxu0 0.0
    %281 = vmatpush.msra.mxu0 0.0
    %282 = vmatpush.msra.mxu0 0.0
    %283 = vmatpush.msra.mxu0 0.0
    %284 = vmatpush.msra.mxu0 0.0
    %285 = vmatpush.msra.mxu0 0.0
    %286 = vmatpush.msra.mxu0 %v275
    %287 = vmatpush.msra.mxu0 %v274
    %288 = vmatpush.msra.mxu0 %v273
    %289 = vmatpush.msra.mxu0 %v272
    %290 = vmatpush.msra.mxu0 %v271
    %291 = vmatpush.msra.mxu0 %v270
    %292 = vmatmul.f32.gmra.mxu0 %v208
    %v293 = vpop.f32.mrf.mxu0
    %v294 = vadd.f32 0.0, %v293
    %295 = vdwg.mxu0
    %296 = vmatpush.msra.mxu0 0.0
    %297 = vmatpush.msra.mxu0 0.0
    %298 = vmatpush.msra.mxu0 0.0
    %299 = vmatpush.msra.mxu0 0.0
    %300 = vmatpush.msra.mxu0 0.0
    %301 = vmatpush.msra.mxu0 0.0
    %302 = vmatpush.msra.mxu0 0.0
    %303 = vmatpush.msra.mxu0 0.0
    %304 = vmatpush.msra.mxu0 0.0
    %305 = vmatpush.msra.mxu0 0.0
    %306 = vmatpush.msra.mxu0 0.0
    %307 = vmatpush.msra.mxu0 0.0
    %308 = vmatpush.msra.mxu0 %v262
    %309 = vmatpush.msra.mxu0 %v261
    %310 = vmatpush.msra.mxu0 %v260
    %311 = vmatpush.msra.mxu0 %v259
    %312 = vmatmul.f32.gmra.mxu0 %v232
    %v313 = vpop.f32.mrf.mxu0
    %v314 = vadd.f32 %v294, %v313
    %315 = vdwg.mxu0
    %v316 = vperm.slane %v175, 2
    %vm317 = vcmp.eq.s32.totalorder %v178, %v316
    %vm318 = vcmp.eq.s32.totalorder %v179, %v316
    %vm319 = vcmp.eq.s32.totalorder %v180, %v316
    %vm320 = vcmp.eq.s32.totalorder %v181, %v316
    %v321 = vsel %vm317, 1.0, 0.0
    %v322 = vsel %vm318, 1.0, 0.0
    %v323 = vsel %vm319, 1.0, 0.0
    %v324 = vsel %vm320, 1.0, 0.0
    %v325 = vperm.slane %v176, 2
    %vm326 = vcmp.eq.s32.totalorder %v178, %v325
    %vm327 = vcmp.eq.s32.totalorder %v179, %v325
    %vm328 = vcmp.eq.s32.totalorder %v180, %v325
    %vm329 = vcmp.eq.s32.totalorder %v181, %v325
    %vm330 = vcmp.eq.s32.totalorder %v182, %v325
    %vm331 = vcmp.eq.s32.totalorder %v183, %v325
    %v332 = vsel %vm326, 1.0, 0.0
    %v333 = vsel %vm327, 1.0, 0.0
    %v334 = vsel %vm328, 1.0, 0.0
    %v335 = vsel %vm329, 1.0, 0.0
    %v336 = vsel %vm330, 1.0, 0.0
    %v337 = vsel %vm331, 1.0, 0.0
    %338 = vmatpush.msra.mxu0 0.0
    %339 = vmatpush.msra.mxu0 0.0
    %340 = vmatpush.msra.mxu0 0.0
    %341 = vmatpush.msra.mxu0 0.0
    %342 = vmatpush.msra.mxu0 0.0
    %343 = vmatpush.msra.mxu0 0.0
    %344 = vmatpush.msra.mxu0 0.0
    %345 = vmatpush.msra.mxu0 0.0
    %346 = vmatpush.msra.mxu0 0.0
    %347 = vmatpush.msra.mxu0 0.0
    %348 = vmatpush.msra.mxu0 %v337
    %349 = vmatpush.msra.mxu0 %v336
    %350 = vmatpush.msra.mxu0 %v335
    %351 = vmatpush.msra.mxu0 %v334
    %352 = vmatpush.msra.mxu0 %v333
    %353 = vmatpush.msra.mxu0 %v332
    %354 = vmatmul.f32.gmra.mxu0 %v208
    %v355 = vpop.f32.mrf.mxu0
    %v356 = vadd.f32 0.0, %v355
    %357 = vdwg.mxu0
    %358 = vmatpush.msra.mxu0 0.0
    %359 = vmatpush.msra.mxu0 0.0
    %360 = vmatpush.msra.mxu0 0.0
    %361 = vmatpush.msra.mxu0 0.0
    %362 = vmatpush.msra.mxu0 0.0
    %363 = vmatpush.msra.mxu0 0.0
    %364 = vmatpush.msra.mxu0 0.0
    %365 = vmatpush.msra.mxu0 0.0
    %366 = vmatpush.msra.mxu0 0.0
    %367 = vmatpush.msra.mxu0 0.0
    %368 = vmatpush.msra.mxu0 0.0
    %369 = vmatpush.msra.mxu0 0.0
    %370 = vmatpush.msra.mxu0 %v324
    %371 = vmatpush.msra.mxu0 %v323
    %372 = vmatpush.msra.mxu0 %v322
    %373 = vmatpush.msra.mxu0 %v321
    %374 = vmatmul.f32.gmra.mxu0 %v232
    %v375 = vpop.f32.mrf.mxu0
    %v376 = vadd.f32 %v356, %v375
    %377 = vdwg.mxu0
    %v378 = vperm.slane %v175, 3
    %vm379 = vcmp.eq.s32.totalorder %v178, %v378
    %vm380 = vcmp.eq.s32.totalorder %v179, %v378
    %vm381 = vcmp.eq.s32.totalorder %v180, %v378
    %vm382 = vcmp.eq.s32.totalorder %v181, %v378
    %v383 = vsel %vm379, 1.0, 0.0
    %v384 = vsel %vm380, 1.0, 0.0
    %v385 = vsel %vm381, 1.0, 0.0
    %v386 = vsel %vm382, 1.0, 0.0
    %v387 = vperm.slane %v176, 3
    %vm388 = vcmp.eq.s32.totalorder %v178, %v387
    %vm389 = vcmp.eq.s32.totalorder %v179, %v387
    %vm390 = vcmp.eq.s32.totalorder %v180, %v387
    %vm391 = vcmp.eq.s32.totalorder %v181, %v387
    %vm392 = vcmp.eq.s32.totalorder %v182, %v387
    %vm393 = vcmp.eq.s32.totalorder %v183, %v387
    %v394 = vsel %vm388, 1.0, 0.0
    %v395 = vsel %vm389, 1.0, 0.0
    %v396 = vsel %vm390, 1.0, 0.0
    %v397 = vsel %vm391, 1.0, 0.0
    %v398 = vsel %vm392, 1.0, 0.0
    %v399 = vsel %vm393, 1.0, 0.0
    %400 = vmatpush.msra.mxu0 0.0
    %401 = vmatpush.msra.mxu0 0.0
    %402 = vmatpush.msra.mxu0 0.0
    %403 = vmatpush.msra.mxu0 0.0
    %404 = vmatpush.msra.mxu0 0.0
    %405 = vmatpush.msra.mxu0 0.0
    %406 = vmatpush.msra.mxu0 0.0
    %407 = vmatpush.msra.mxu0 0.0
    %408 = vmatpush.msra.mxu0 0.0
    %409 = vmatpush.msra.mxu0 0.0
    %410 = vmatpush.msra.mxu0 %v399
    %411 = vmatpush.msra.mxu0 %v398
    %412 = vmatpush.msra.mxu0 %v397
    %413 = vmatpush.msra.mxu0 %v396
    %414 = vmatpush.msra.mxu0 %v395
    %415 = vmatpush.msra.mxu0 %v394
    %416 = vmatmul.f32.gmra.mxu0 %v208
    %v417 = vpop.f32.mrf.mxu0
    %v418 = vadd.f32 0.0, %v417
    %419 = vdwg.mxu0
    %420 = vmatpush.msra.mxu0 0.0
    %421 = vmatpush.msra.mxu0 0.0
    %422 = vmatpush.msra.mxu0 0.0
    %423 = vmatpush.msra.mxu0 0.0
    %424 = vmatpush.msra.mxu0 0.0
    %425 = vmatpush.msra.mxu0 0.0
    %426 = vmatpush.msra.mxu0 0.0
    %427 = vmatpush.msra.mxu0 0.0
    %428 = vmatpush.msra.mxu0 0.0
    %429 = vmatpush.msra.mxu0 0.0
    %430 = vmatpush.msra.mxu0 0.0
    %431 = vmatpush.msra.mxu0 0.0
    %432 = vmatpush.msra.mxu0 %v386
    %433 = vmatpush.msra.mxu0 %v385
    %434 = vmatpush.msra.mxu0 %v384
    %435 = vmatpush.msra.mxu0 %v383
    %436 = vmatmul.f32.gmra.mxu0 %v232
    %v437 = vpop.f32.mrf.mxu0
    %v438 = vadd.f32 %v418, %v437
    %439 = vdwg.mxu0
    %v440 = vperm.slane %v175, 4
    %vm441 = vcmp.eq.s32.totalorder %v178, %v440
    %vm442 = vcmp.eq.s32.totalorder %v179, %v440
    %vm443 = vcmp.eq.s32.totalorder %v180, %v440
    %vm444 = vcmp.eq.s32.totalorder %v181, %v440
    %v445 = vsel %vm441, 1.0, 0.0
    %v446 = vsel %vm442, 1.0, 0.0
    %v447 = vsel %vm443, 1.0, 0.0
    %v448 = vsel %vm444, 1.0, 0.0
    %v449 = vperm.slane %v176, 4
    %vm450 = vcmp.eq.s32.totalorder %v178, %v449
    %vm451 = vcmp.eq.s32.totalorder %v179, %v449
    %vm452 = vcmp.eq.s32.totalorder %v180, %v449
    %vm453 = vcmp.eq.s32.totalorder %v181, %v449
    %vm454 = vcmp.eq.s32.totalorder %v182, %v449
    %vm455 = vcmp.eq.s32.totalorder %v183, %v449
    %v456 = vsel %vm450, 1.0, 0.0
    %v457 = vsel %vm451, 1.0, 0.0
    %v458 = vsel %vm452, 1.0, 0.0
    %v459 = vsel %vm453, 1.0, 0.0
    %v460 = vsel %vm454, 1.0, 0.0
    %v461 = vsel %vm455, 1.0, 0.0
    %462 = vmatpush.msra.mxu0 0.0
    %463 = vmatpush.msra.mxu0 0.0
    %464 = vmatpush.msra.mxu0 0.0
    %465 = vmatpush.msra.mxu0 0.0
    %466 = vmatpush.msra.mxu0 0.0
    %467 = vmatpush.msra.mxu0 0.0
    %468 = vmatpush.msra.mxu0 0.0
    %469 = vmatpush.msra.mxu0 0.0
    %470 = vmatpush.msra.mxu0 0.0
    %471 = vmatpush.msra.mxu0 0.0
    %472 = vmatpush.msra.mxu0 %v461
    %473 = vmatpush.msra.mxu0 %v460
    %474 = vmatpush.msra.mxu0 %v459
    %475 = vmatpush.msra.mxu0 %v458
    %476 = vmatpush.msra.mxu0 %v457
    %477 = vmatpush.msra.mxu0 %v456
    %478 = vmatmul.f32.gmra.mxu0 %v208
    %v479 = vpop.f32.mrf.mxu0
    %v480 = vadd.f32 0.0, %v479
    %481 = vdwg.mxu0
    %482 = vmatpush.msra.mxu0 0.0
    %483 = vmatpush.msra.mxu0 0.0
    %484 = vmatpush.msra.mxu0 0.0
    %485 = vmatpush.msra.mxu0 0.0
    %486 = vmatpush.msra.mxu0 0.0
    %487 = vmatpush.msra.mxu0 0.0
    %488 = vmatpush.msra.mxu0 0.0
    %489 = vmatpush.msra.mxu0 0.0
    %490 = vmatpush.msra.mxu0 0.0
    %491 = vmatpush.msra.mxu0 0.0
    %492 = vmatpush.msra.mxu0 0.0
    %493 = vmatpush.msra.mxu0 0.0
    %494 = vmatpush.msra.mxu0 %v448
    %495 = vmatpush.msra.mxu0 %v447
    %496 = vmatpush.msra.mxu0 %v446
    %497 = vmatpush.msra.mxu0 %v445
    %498 = vmatmul.f32.gmra.mxu0 %v232
    %v499 = vpop.f32.mrf.mxu0
    %v500 = vadd.f32 %v480, %v499
    %501 = vdwg.mxu0
    %v502 = vperm.slane %v175, 5
    %vm503 = vcmp.eq.s32.totalorder %v178, %v502
    %vm504 = vcmp.eq.s32.totalorder %v179, %v502
    %vm505 = vcmp.eq.s32.totalorder %v180, %v502
    %vm506 = vcmp.eq.s32.totalorder %v181, %v502
    %v507 = vsel %vm503, 1.0, 0.0
    %v508 = vsel %vm504, 1.0, 0.0
    %v509 = vsel %vm505, 1.0, 0.0
    %v510 = vsel %vm506, 1.0, 0.0
    %v511 = vperm.slane %v176, 5
    %vm512 = vcmp.eq.s32.totalorder %v178, %v511
    %vm513 = vcmp.eq.s32.totalorder %v179, %v511
    %vm514 = vcmp.eq.s32.totalorder %v180, %v511
    %vm515 = vcmp.eq.s32.totalorder %v181, %v511
    %vm516 = vcmp.eq.s32.totalorder %v182, %v511
    %vm517 = vcmp.eq.s32.totalorder %v183, %v511
    %v518 = vsel %vm512, 1.0, 0.0
    %v519 = vsel %vm513, 1.0, 0.0
    %v520 = vsel %vm514, 1.0, 0.0
    %v521 = vsel %vm515, 1.0, 0.0
    %v522 = vsel %vm516, 1.0, 0.0
    %v523 = vsel %vm517, 1.0, 0.0
    %524 = vmatpush.msra.mxu0 0.0
    %525 = vmatpush.msra.mxu0 0.0
    %526 = vmatpush.msra.mxu0 0.0
    %527 = vmatpush.msra.mxu0 0.0
    %528 = vmatpush.msra.mxu0 0.0
    %529 = vmatpush.msra.mxu0 0.0
    %530 = vmatpush.msra.mxu0 0.0
    %531 = vmatpush.msra.mxu0 0.0
    %532 = vmatpush.msra.mxu0 0.0
    %533 = vmatpush.msra.mxu0 0.0
    %534 = vmatpush.msra.mxu0 %v523
    %535 = vmatpush.msra.mxu0 %v522
    %536 = vmatpush.msra.mxu0 %v521
    %537 = vmatpush.msra.mxu0 %v520
    %538 = vmatpush.msra.mxu0 %v519
    %539 = vmatpush.msra.mxu0 %v518
    %540 = vmatmul.f32.gmra.mxu0 %v208
    %v541 = vpop.f32.mrf.mxu0
    %v542 = vadd.f32 0.0, %v541
    %543 = vdwg.mxu0
    %544 = vmatpush.msra.mxu0 0.0
    %545 = vmatpush.msra.mxu0 0.0
    %546 = vmatpush.msra.mxu0 0.0
    %547 = vmatpush.msra.mxu0 0.0
    %548 = vmatpush.msra.mxu0 0.0
    %549 = vmatpush.msra.mxu0 0.0
    %550 = vmatpush.msra.mxu0 0.0
    %551 = vmatpush.msra.mxu0 0.0
    %552 = vmatpush.msra.mxu0 0.0
    %553 = vmatpush.msra.mxu0 0.0
    %554 = vmatpush.msra.mxu0 0.0
    %555 = vmatpush.msra.mxu0 0.0
    %556 = vmatpush.msra.mxu0 %v510
    %557 = vmatpush.msra.mxu0 %v509
    %558 = vmatpush.msra.mxu0 %v508
    %559 = vmatpush.msra.mxu0 %v507
    %560 = vmatmul.f32.gmra.mxu0 %v232
    %v561 = vpop.f32.mrf.mxu0
    %v562 = vadd.f32 %v542, %v561
    %563 = vdwg.mxu0
    %v564 = vperm.slane %v175, 6
    %vm565 = vcmp.eq.s32.totalorder %v178, %v564
    %vm566 = vcmp.eq.s32.totalorder %v179, %v564
    %vm567 = vcmp.eq.s32.totalorder %v180, %v564
    %vm568 = vcmp.eq.s32.totalorder %v181, %v564
    %v569 = vsel %vm565, 1.0, 0.0
    %v570 = vsel %vm566, 1.0, 0.0
    %v571 = vsel %vm567, 1.0, 0.0
    %v572 = vsel %vm568, 1.0, 0.0
    %v573 = vperm.slane %v176, 6
    %vm574 = vcmp.eq.s32.totalorder %v178, %v573
    %vm575 = vcmp.eq.s32.totalorder %v179, %v573
    %vm576 = vcmp.eq.s32.totalorder %v180, %v573
    %vm577 = vcmp.eq.s32.totalorder %v181, %v573
    %vm578 = vcmp.eq.s32.totalorder %v182, %v573
    %vm579 = vcmp.eq.s32.totalorder %v183, %v573
    %v580 = vsel %vm574, 1.0, 0.0
    %v581 = vsel %vm575, 1.0, 0.0
    %v582 = vsel %vm576, 1.0, 0.0
    %v583 = vsel %vm577, 1.0, 0.0
    %v584 = vsel %vm578, 1.0, 0.0
    %v585 = vsel %vm579, 1.0, 0.0
    %586 = vmatpush.msra.mxu0 0.0
    %587 = vmatpush.msra.mxu0 0.0
    %588 = vmatpush.msra.mxu0 0.0
    %589 = vmatpush.msra.mxu0 0.0
    %590 = vmatpush.msra.mxu0 0.0
    %591 = vmatpush.msra.mxu0 0.0
    %592 = vmatpush.msra.mxu0 0.0
    %593 = vmatpush.msra.mxu0 0.0
    %594 = vmatpush.msra.mxu0 0.0
    %595 = vmatpush.msra.mxu0 0.0
    %596 = vmatpush.msra.mxu0 %v585
    %597 = vmatpush.msra.mxu0 %v584
    %598 = vmatpush.msra.mxu0 %v583
    %599 = vmatpush.msra.mxu0 %v582
    %600 = vmatpush.msra.mxu0 %v581
    %601 = vmatpush.msra.mxu0 %v580
    %602 = vmatmul.f32.gmra.mxu0 %v208
    %v603 = vpop.f32.mrf.mxu0
    %v604 = vadd.f32 0.0, %v603
    %605 = vdwg.mxu0
    %606 = vmatpush.msra.mxu0 0.0
    %607 = vmatpush.msra.mxu0 0.0
    %608 = vmatpush.msra.mxu0 0.0
    %609 = vmatpush.msra.mxu0 0.0
    %610 = vmatpush.msra.mxu0 0.0
    %611 = vmatpush.msra.mxu0 0.0
    %612 = vmatpush.msra.mxu0 0.0
    %613 = vmatpush.msra.mxu0 0.0
    %614 = vmatpush.msra.mxu0 0.0
    %615 = vmatpush.msra.mxu0 0.0
    %616 = vmatpush.msra.mxu0 0.0
    %617 = vmatpush.msra.mxu0 0.0
    %618 = vmatpush.msra.mxu0 %v572
    %619 = vmatpush.msra.mxu0 %v571
    %620 = vmatpush.msra.mxu0 %v570
    %621 = vmatpush.msra.mxu0 %v569
    %622 = vmatmul.f32.gmra.mxu0 %v232
    %v623 = vpop.f32.mrf.mxu0
    %v624 = vadd.f32 %v604, %v623
    %625 = vdwg.mxu0
    %v626 = vperm.slane %v175, 7
    %vm627 = vcmp.eq.s32.totalorder %v178, %v626
    %vm628 = vcmp.eq.s32.totalorder %v179, %v626
    %vm629 = vcmp.eq.s32.totalorder %v180, %v626
    %vm630 = vcmp.eq.s32.totalorder %v181, %v626
    %v631 = vsel %vm627, 1.0, 0.0
    %v632 = vsel %vm628, 1.0, 0.0
    %v633 = vsel %vm629, 1.0, 0.0
    %v634 = vsel %vm630, 1.0, 0.0
    %v635 = vperm.slane %v176, 7
    %vm636 = vcmp.eq.s32.totalorder %v178, %v635
    %vm637 = vcmp.eq.s32.totalorder %v179, %v635
    %vm638 = vcmp.eq.s32.totalorder %v180, %v635
    %vm639 = vcmp.eq.s32.totalorder %v181, %v635
    %vm640 = vcmp.eq.s32.totalorder %v182, %v635
    %vm641 = vcmp.eq.s32.totalorder %v183, %v635
    %v642 = vsel %vm636, 1.0, 0.0
    %v643 = vsel %vm637, 1.0, 0.0
    %v644 = vsel %vm638, 1.0, 0.0
    %v645 = vsel %vm639, 1.0, 0.0
    %v646 = vsel %vm640, 1.0, 0.0
    %v647 = vsel %vm641, 1.0, 0.0
    %648 = vmatpush.msra.mxu0 0.0
    %649 = vmatpush.msra.mxu0 0.0
    %650 = vmatpush.msra.mxu0 0.0
    %651 = vmatpush.msra.mxu0 0.0
    %652 = vmatpush.msra.mxu0 0.0
    %653 = vmatpush.msra.mxu0 0.0
    %654 = vmatpush.msra.mxu0 0.0
    %655 = vmatpush.msra.mxu0 0.0
    %656 = vmatpush.msra.mxu0 0.0
    %657 = vmatpush.msra.mxu0 0.0
    %658 = vmatpush.msra.mxu0 %v647
    %659 = vmatpush.msra.mxu0 %v646
    %660 = vmatpush.msra.mxu0 %v645
    %661 = vmatpush.msra.mxu0 %v644
    %662 = vmatpush.msra.mxu0 %v643
    %663 = vmatpush.msra.mxu0 %v642
    %664 = vmatmul.f32.gmra.mxu0 %v208
    %v665 = vpop.f32.mrf.mxu0
    %v666 = vadd.f32 0.0, %v665
    %667 = vdwg.mxu0
    %668 = vmatpush.msra.mxu0 0.0
    %669 = vmatpush.msra.mxu0 0.0
    %670 = vmatpush.msra.mxu0 0.0
    %671 = vmatpush.msra.mxu0 0.0
    %672 = vmatpush.msra.mxu0 0.0
    %673 = vmatpush.msra.mxu0 0.0
    %674 = vmatpush.msra.mxu0 0.0
    %675 = vmatpush.msra.mxu0 0.0
    %676 = vmatpush.msra.mxu0 0.0
    %677 = vmatpush.msra.mxu0 0.0
    %678 = vmatpush.msra.mxu0 0.0
    %679 = vmatpush.msra.mxu0 0.0
    %680 = vmatpush.msra.mxu0 %v634
    %681 = vmatpush.msra.mxu0 %v633
    %682 = vmatpush.msra.mxu0 %v632
    %683 = vmatpush.msra.mxu0 %v631
    %684 = vmatmul.f32.gmra.mxu0 %v232
    %v685 = vpop.f32.mrf.mxu0
    %v686 = vadd.f32 %v666, %v685
    %687 = vdwg.mxu0
    %v689 = vrot.slane %v314, 7
    %v692 = vrot.slane %v376, 6
    %v695 = vrot.slane %v438, 5
    %v698 = vrot.slane %v500, 4
    %v701 = vrot.slane %v562, 3
    %v704 = vrot.slane %v624, 2
    %v707 = vrot.slane %v686, 1
    %vm709 = vcmask 1040384
    %v710 = vsel %vm709, %v252, %v689
    %vm711 = vcmask 1041408
    %v712 = vsel %vm711, %v710, %v692
    %vm713 = vcmask 1042432
    %v714 = vsel %vm713, %v712, %v695
    %vm715 = vcmask 1043456
    %v716 = vsel %vm715, %v714, %v698
    %vm717 = vcmask 1044480
    %v718 = vsel %vm717, %v716, %v701
    %vm719 = vcmask 1045504
    %v720 = vsel %vm719, %v718, %v704
    %vm721 = vcmask 1046528
    %v722 = vsel %vm721, %v720, %v707
    %v723 = vld [vmem:[#allocation2] sm:$0x1]
    %v725 = vperm.slane %v723, 0
    %726 = vset.pattern.permute.xlu0 0
    %727 = vperm.xlu0 %726, %v725
    %v728 = vpop.permute.xlu0 %727
    %v730 = vadd.f32 %v722, %v728
    %731 = vst [vmem:[#allocation11] sm:$0xff] %v730
    // Predicated region
    $region42: #{tpu_custom_call.1} parent=1 // pred_check
      _
    $region43: #{tpu_custom_call.1} parent=1 // pred_check_branch
      %733 = sbr.rel (0) target = $region45
    $region44: #{tpu_custom_call.1} parent=1 // pred_region
      %735 = vsyncadd [#allocation5], 0
      %s737 = sshll.u32 [#allocation11], 4
      %s738 = int_to_ptr.vmem [resolvable:$true] %s737
      %s739 = sshll.u32 %s6, 4
      %s740 = int_to_ptr.hbm [resolvable:$true] %s739
      %742 = dma.vmem_to_hbm [thread:$0]  %s738, 128, %s740, [#allocation5]
    $region45: #{tpu_custom_call.1} parent=1 // pred_fallthru
      _
    // Predicated region
    $region46: #{tpu_custom_call.1} parent=1 // pred_check
      _
    $region47: #{tpu_custom_call.1} parent=1 // pred_check_branch
      %744 = sbr.rel (0) target = $region49
    $region48: #{tpu_custom_call.1} parent=1 // pred_region
      %746 = dma.done [#allocation5], 128
    $region49: #{tpu_custom_call.1} parent=1 // pred_fallthru
      _
    %747 = vsyncpa [#allocation4], 1
    %748 = vsyncpa [#allocation7], 1
    %749 = vsyncpa [#allocation10], 1
    %750 = vsyncpa [#allocation5], 1

</llo_original>
